<compile_context>
chip_gen: v6e
topology: v6e:2x2x1
jax: 0.10.0
libtpu: 0.0.40
codegen_flags: <defaults>
</compile_context>

<pallas_src>
import jax
import jax.numpy as jnp
from jax import lax
from jax.experimental import pallas as pl
from jax.experimental.pallas import tpu as pltpu


def rnn_linear_kernel(x_ref, wih_ref, whh_ref, bih_ref, bhh_ref,
                      wlin_ref, blin_ref, out_ref):
    """Whole forward in one invocation.

    x_ref:    (B, S, I)  batch-first input (full block, resident in VMEM)
    wih_ref:  (H, I)     W_ih (PyTorch layout, not transposed)
    whh_ref:  (H, H)     W_hh
    bih_ref:  (1, H)     b_ih
    bhh_ref:  (1, H)     b_hh
    wlin_ref: (O, H)     W_lin
    blin_ref: (1, O)     b_lin
    out_ref:  (B, O)     linear output on the last hidden state
    """
    B, S, I = x_ref.shape
    H = whh_ref.shape[0]

    # Fused recurrent weight [W_ih | W_hh] -> (H, I+H); built once per call in VMEM.
    w_cat = jnp.concatenate([wih_ref[...], whh_ref[...]], axis=1)
    b = bih_ref[...] + bhh_ref[...]                       # (1, H)

    # Contract last dim of both operands == x @ W^T, with no transposed weight copies.
    dn = (((1,), (1,)), ((), ()))

    h = jnp.zeros((B, H), jnp.float32)
    # S is small & static -> fully unrolled; static slices along the time axis.
    for t in range(S):
        xh = jnp.concatenate([x_ref[:, t, :], h], axis=1)  # (B, I+H)
        h = jnp.tanh(
            lax.dot_general(xh, w_cat, dn, preferred_element_type=jnp.float32) + b
        )

    out = lax.dot_general(h, wlin_ref[...], dn,
                          preferred_element_type=jnp.float32) + blin_ref[...]
    out_ref[...] = out.astype(out_ref.dtype)


@jax.jit
def df_submodule_forward(x, w_ih, w_hh, b_ih, b_hh, w_lin, b_lin):
    """Matches DF_submodule.forward: rnn(x) -> last timestep -> linear -> view(-1)."""
    B, S, I = x.shape
    H = w_ih.shape[0]
    O = w_lin.shape[0]

    # Free (layout-only) reshapes of the 1-D biases to 2-D; no transposes / HBM copies.
    b_ih2 = b_ih.reshape(1, H)
    b_hh2 = b_hh.reshape(1, H)
    b_l2 = b_lin.reshape(1, O)

    out = pl.pallas_call(
        rnn_linear_kernel,
        out_shape=jax.ShapeDtypeStruct((B, O), x.dtype),
        grid=(1,),  # single invocation; recurrence lives inside the kernel
        in_specs=[
            pl.BlockSpec((B, S, I), lambda i: (0, 0, 0)),
            pl.BlockSpec((H, I), lambda i: (0, 0)),
            pl.BlockSpec((H, H), lambda i: (0, 0)),
            pl.BlockSpec((1, H), lambda i: (0, 0)),
            pl.BlockSpec((1, H), lambda i: (0, 0)),
            pl.BlockSpec((O, H), lambda i: (0, 0)),
            pl.BlockSpec((1, O), lambda i: (0, 0)),
        ],
        out_specs=pl.BlockSpec((B, O), lambda i: (0, 0)),
        compiler_params=pltpu.CompilerParams(
            dimension_semantics=("arbitrary",)),
    )(x, w_ih, w_hh, b_ih2, b_hh2, w_lin, b_l2)

    return out.reshape(-1)  # == out_2.view(-1)


def reference_forward(x, w_ih, w_hh, b_ih, b_hh, w_lin, b_lin):
    """Pure-JAX reference matching torch.nn.RNN(tanh, num_layers=1, batch_first=True)."""
    B, S, I = x.shape
    H = w_ih.shape[0]
    h = jnp.zeros((B, H), jnp.float32)

    def step(h, x_t):
        h = jnp.tanh(x_t @ w_ih.T + b_ih + h @ w_hh.T + b_hh)
        return h, None

    h_last, _ = lax.scan(step, h, jnp.transpose(x, (1, 0, 2)))
    out = h_last @ w_lin.T + b_lin
    return out.reshape(-1)


if __name__ == "__main__":
    # Sizes consistent with the module's forward:
    #   input_DF_size=16, hidden_DF_size=32, out_2_size=4, batch=2, seq=8
    B, S, I, H, O = 2, 8, 16, 32, 4

    key = jax.random.PRNGKey(0)
    kx, k1, k2, k3, k4, k5, k6 = jax.random.split(key, 7)

    x = jax.random.normal(kx, (B, S, I), dtype=jnp.float32)

    # Deterministic PyTorch-style init: U(-1/sqrt(H), 1/sqrt(H))
    bound = 1.0 / jnp.sqrt(jnp.float32(H))
    w_ih = jax.random.uniform(k1, (H, I), jnp.float32, -bound, bound)
    w_hh = jax.random.uniform(k2, (H, H), jnp.float32, -bound, bound)
    b_ih = jax.random.uniform(k3, (H,), jnp.float32, -bound, bound)
    b_hh = jax.random.uniform(k4, (H,), jnp.float32, -bound, bound)
    w_lin = jax.random.uniform(k5, (O, H), jnp.float32, -bound, bound)
    b_lin = jax.random.uniform(k6, (O,), jnp.float32, -bound, bound)

    out = df_submodule_forward(x, w_ih, w_hh, b_ih, b_hh, w_lin, b_lin)
    out = jax.block_until_ready(out)

    ref = reference_forward(x, w_ih, w_hh, b_ih, b_hh, w_lin, b_lin)
    assert out.shape == (B * O,), out.shape
    assert jnp.allclose(out, ref, atol=1e-5, rtol=1e-5), (out, ref)

    # TODO(synk): self.relu is declared in the module but never used in forward();
    # rnn.flatten_parameters() is a PyTorch weight-layout hint with no Pallas equivalent.
    print("KERNEL_OK")
</pallas_src>

<mosaic_0001>
module attributes {stable_mosaic.version = 11 : i64} {
  func.func @rnn_linear_kernel(%arg0: i32, %arg1: memref<2x8x16xf32, #tpu.memory_space<vmem>>, %arg2: memref<32x16xf32, #tpu.memory_space<vmem>>, %arg3: memref<32x32xf32, #tpu.memory_space<vmem>>, %arg4: memref<1x32xf32, #tpu.memory_space<vmem>>, %arg5: memref<1x32xf32, #tpu.memory_space<vmem>>, %arg6: memref<4x32xf32, #tpu.memory_space<vmem>>, %arg7: memref<1x4xf32, #tpu.memory_space<vmem>>, %arg8: memref<2x4xf32, #tpu.memory_space<vmem>>) attributes {dimension_semantics = [#tpu.dimension_semantics<arbitrary>], iteration_bounds = array<i64: 1>, scalar_prefetch = 0 : i64, scratch_operands = 0 : i64, tpu.core_type = #tpu.core_type<tc>, window_params = [{pipeline_mode = #tpu.pipeline_mode<synchronous>, transform_indices = @transform_0, window_bounds = array<i64: 2, 8, 16>}, {pipeline_mode = #tpu.pipeline_mode<synchronous>, transform_indices = @transform_1, window_bounds = array<i64: 32, 16>}, {pipeline_mode = #tpu.pipeline_mode<synchronous>, transform_indices = @transform_2, window_bounds = array<i64: 32, 32>}, {pipeline_mode = #tpu.pipeline_mode<synchronous>, transform_indices = @transform_3, window_bounds = array<i64: 1, 32>}, {pipeline_mode = #tpu.pipeline_mode<synchronous>, transform_indices = @transform_4, window_bounds = array<i64: 1, 32>}, {pipeline_mode = #tpu.pipeline_mode<synchronous>, transform_indices = @transform_5, window_bounds = array<i64: 4, 32>}, {pipeline_mode = #tpu.pipeline_mode<synchronous>, transform_indices = @transform_6, window_bounds = array<i64: 1, 4>}, {pipeline_mode = #tpu.pipeline_mode<synchronous>, transform_indices = @transform_7, window_bounds = array<i64: 2, 4>}]} {
    %c0 = arith.constant 0 : index
    %c0_0 = arith.constant 0 : index
    %0 = vector.load %arg2[%c0, %c0_0] : memref<32x16xf32, #tpu.memory_space<vmem>>, vector<32x16xf32>
    %c0_1 = arith.constant 0 : index
    %c0_2 = arith.constant 0 : index
    %1 = vector.load %arg3[%c0_1, %c0_2] : memref<32x32xf32, #tpu.memory_space<vmem>>, vector<32x32xf32>
    %2 = tpu.concatenate %0, %1 in 1 : vector<32x16xf32>, vector<32x32xf32> -> vector<32x48xf32>
    %c0_3 = arith.constant 0 : index
    %c0_4 = arith.constant 0 : index
    %3 = vector.load %arg4[%c0_3, %c0_4] : memref<1x32xf32, #tpu.memory_space<vmem>>, vector<1x32xf32>
    %c0_5 = arith.constant 0 : index
    %c0_6 = arith.constant 0 : index
    %4 = vector.load %arg5[%c0_5, %c0_6] : memref<1x32xf32, #tpu.memory_space<vmem>>, vector<1x32xf32>
    %5 = arith.addf %3, %4 : vector<1x32xf32>
    %cst = arith.constant 0.000000e+00 : f32
    %6 = vector.broadcast %cst : f32 to vector<2x32xf32>
    %c0_7 = arith.constant 0 : index
    %c0_8 = arith.constant 0 : index
    %c0_9 = arith.constant 0 : index
    %7 = vector.load %arg1[%c0_7, %c0_8, %c0_9] : memref<2x8x16xf32, #tpu.memory_space<vmem>>, vector<2x1x16xf32>
    %8 = vector.shape_cast %7 : vector<2x1x16xf32> to vector<2x16xf32>
    %9 = tpu.concatenate %8, %6 in 1 : vector<2x16xf32>, vector<2x32xf32> -> vector<2x48xf32>
    %cst_10 = arith.constant dense<0.000000e+00> : vector<2x32xf32>
    %10 = tpu.matmul %9, %2, %cst_10 {dimension_numbers = #tpu.dot_dimension_numbers<[1], [1], [0], [0], [0, 0, 1, 0], [], []>} : vector<2x48xf32>, vector<32x48xf32>, vector<2x32xf32> -> vector<2x32xf32>
    %11 = vector.broadcast %5 : vector<1x32xf32> to vector<2x32xf32>
    %12 = arith.addf %10, %11 : vector<2x32xf32>
    %13 = math.tanh %12 : vector<2x32xf32>
    %c0_11 = arith.constant 0 : index
    %c1 = arith.constant 1 : index
    %c0_12 = arith.constant 0 : index
    %14 = vector.load %arg1[%c0_11, %c1, %c0_12] : memref<2x8x16xf32, #tpu.memory_space<vmem>>, vector<2x1x16xf32>
    %15 = vector.shape_cast %14 : vector<2x1x16xf32> to vector<2x16xf32>
    %16 = tpu.concatenate %15, %13 in 1 : vector<2x16xf32>, vector<2x32xf32> -> vector<2x48xf32>
    %cst_13 = arith.constant dense<0.000000e+00> : vector<2x32xf32>
    %17 = tpu.matmul %16, %2, %cst_13 {dimension_numbers = #tpu.dot_dimension_numbers<[1], [1], [0], [0], [0, 0, 1, 0], [], []>} : vector<2x48xf32>, vector<32x48xf32>, vector<2x32xf32> -> vector<2x32xf32>
    %18 = vector.broadcast %5 : vector<1x32xf32> to vector<2x32xf32>
    %19 = arith.addf %17, %18 : vector<2x32xf32>
    %20 = math.tanh %19 : vector<2x32xf32>
    %c0_14 = arith.constant 0 : index
    %c2 = arith.constant 2 : index
    %c0_15 = arith.constant 0 : index
    %21 = vector.load %arg1[%c0_14, %c2, %c0_15] : memref<2x8x16xf32, #tpu.memory_space<vmem>>, vector<2x1x16xf32>
    %22 = vector.shape_cast %21 : vector<2x1x16xf32> to vector<2x16xf32>
    %23 = tpu.concatenate %22, %20 in 1 : vector<2x16xf32>, vector<2x32xf32> -> vector<2x48xf32>
    %cst_16 = arith.constant dense<0.000000e+00> : vector<2x32xf32>
    %24 = tpu.matmul %23, %2, %cst_16 {dimension_numbers = #tpu.dot_dimension_numbers<[1], [1], [0], [0], [0, 0, 1, 0], [], []>} : vector<2x48xf32>, vector<32x48xf32>, vector<2x32xf32> -> vector<2x32xf32>
    %25 = vector.broadcast %5 : vector<1x32xf32> to vector<2x32xf32>
    %26 = arith.addf %24, %25 : vector<2x32xf32>
    %27 = math.tanh %26 : vector<2x32xf32>
    %c0_17 = arith.constant 0 : index
    %c3 = arith.constant 3 : index
    %c0_18 = arith.constant 0 : index
    %28 = vector.load %arg1[%c0_17, %c3, %c0_18] : memref<2x8x16xf32, #tpu.memory_space<vmem>>, vector<2x1x16xf32>
    %29 = vector.shape_cast %28 : vector<2x1x16xf32> to vector<2x16xf32>
    %30 = tpu.concatenate %29, %27 in 1 : vector<2x16xf32>, vector<2x32xf32> -> vector<2x48xf32>
    %cst_19 = arith.constant dense<0.000000e+00> : vector<2x32xf32>
    %31 = tpu.matmul %30, %2, %cst_19 {dimension_numbers = #tpu.dot_dimension_numbers<[1], [1], [0], [0], [0, 0, 1, 0], [], []>} : vector<2x48xf32>, vector<32x48xf32>, vector<2x32xf32> -> vector<2x32xf32>
    %32 = vector.broadcast %5 : vector<1x32xf32> to vector<2x32xf32>
    %33 = arith.addf %31, %32 : vector<2x32xf32>
    %34 = math.tanh %33 : vector<2x32xf32>
    %c0_20 = arith.constant 0 : index
    %c4 = arith.constant 4 : index
    %c0_21 = arith.constant 0 : index
    %35 = vector.load %arg1[%c0_20, %c4, %c0_21] : memref<2x8x16xf32, #tpu.memory_space<vmem>>, vector<2x1x16xf32>
    %36 = vector.shape_cast %35 : vector<2x1x16xf32> to vector<2x16xf32>
    %37 = tpu.concatenate %36, %34 in 1 : vector<2x16xf32>, vector<2x32xf32> -> vector<2x48xf32>
    %cst_22 = arith.constant dense<0.000000e+00> : vector<2x32xf32>
    %38 = tpu.matmul %37, %2, %cst_22 {dimension_numbers = #tpu.dot_dimension_numbers<[1], [1], [0], [0], [0, 0, 1, 0], [], []>} : vector<2x48xf32>, vector<32x48xf32>, vector<2x32xf32> -> vector<2x32xf32>
    %39 = vector.broadcast %5 : vector<1x32xf32> to vector<2x32xf32>
    %40 = arith.addf %38, %39 : vector<2x32xf32>
    %41 = math.tanh %40 : vector<2x32xf32>
    %c0_23 = arith.constant 0 : index
    %c5 = arith.constant 5 : index
    %c0_24 = arith.constant 0 : index
    %42 = vector.load %arg1[%c0_23, %c5, %c0_24] : memref<2x8x16xf32, #tpu.memory_space<vmem>>, vector<2x1x16xf32>
    %43 = vector.shape_cast %42 : vector<2x1x16xf32> to vector<2x16xf32>
    %44 = tpu.concatenate %43, %41 in 1 : vector<2x16xf32>, vector<2x32xf32> -> vector<2x48xf32>
    %cst_25 = arith.constant dense<0.000000e+00> : vector<2x32xf32>
    %45 = tpu.matmul %44, %2, %cst_25 {dimension_numbers = #tpu.dot_dimension_numbers<[1], [1], [0], [0], [0, 0, 1, 0], [], []>} : vector<2x48xf32>, vector<32x48xf32>, vector<2x32xf32> -> vector<2x32xf32>
    %46 = vector.broadcast %5 : vector<1x32xf32> to vector<2x32xf32>
    %47 = arith.addf %45, %46 : vector<2x32xf32>
    %48 = math.tanh %47 : vector<2x32xf32>
    %c0_26 = arith.constant 0 : index
    %c6 = arith.constant 6 : index
    %c0_27 = arith.constant 0 : index
    %49 = vector.load %arg1[%c0_26, %c6, %c0_27] : memref<2x8x16xf32, #tpu.memory_space<vmem>>, vector<2x1x16xf32>
    %50 = vector.shape_cast %49 : vector<2x1x16xf32> to vector<2x16xf32>
    %51 = tpu.concatenate %50, %48 in 1 : vector<2x16xf32>, vector<2x32xf32> -> vector<2x48xf32>
    %cst_28 = arith.constant dense<0.000000e+00> : vector<2x32xf32>
    %52 = tpu.matmul %51, %2, %cst_28 {dimension_numbers = #tpu.dot_dimension_numbers<[1], [1], [0], [0], [0, 0, 1, 0], [], []>} : vector<2x48xf32>, vector<32x48xf32>, vector<2x32xf32> -> vector<2x32xf32>
    %53 = vector.broadcast %5 : vector<1x32xf32> to vector<2x32xf32>
    %54 = arith.addf %52, %53 : vector<2x32xf32>
    %55 = math.tanh %54 : vector<2x32xf32>
    %c0_29 = arith.constant 0 : index
    %c7 = arith.constant 7 : index
    %c0_30 = arith.constant 0 : index
    %56 = vector.load %arg1[%c0_29, %c7, %c0_30] : memref<2x8x16xf32, #tpu.memory_space<vmem>>, vector<2x1x16xf32>
    %57 = vector.shape_cast %56 : vector<2x1x16xf32> to vector<2x16xf32>
    %58 = tpu.concatenate %57, %55 in 1 : vector<2x16xf32>, vector<2x32xf32> -> vector<2x48xf32>
    %cst_31 = arith.constant dense<0.000000e+00> : vector<2x32xf32>
    %59 = tpu.matmul %58, %2, %cst_31 {dimension_numbers = #tpu.dot_dimension_numbers<[1], [1], [0], [0], [0, 0, 1, 0], [], []>} : vector<2x48xf32>, vector<32x48xf32>, vector<2x32xf32> -> vector<2x32xf32>
    %60 = vector.broadcast %5 : vector<1x32xf32> to vector<2x32xf32>
    %61 = arith.addf %59, %60 : vector<2x32xf32>
    %62 = math.tanh %61 : vector<2x32xf32>
    %c0_32 = arith.constant 0 : index
    %c0_33 = arith.constant 0 : index
    %63 = vector.load %arg6[%c0_32, %c0_33] : memref<4x32xf32, #tpu.memory_space<vmem>>, vector<4x32xf32>
    %cst_34 = arith.constant dense<0.000000e+00> : vector<2x4xf32>
    %64 = tpu.matmul %62, %63, %cst_34 {dimension_numbers = #tpu.dot_dimension_numbers<[1], [1], [0], [0], [0, 0, 1, 0], [], []>} : vector<2x32xf32>, vector<4x32xf32>, vector<2x4xf32> -> vector<2x4xf32>
    %c0_35 = arith.constant 0 : index
    %c0_36 = arith.constant 0 : index
    %65 = vector.load %arg7[%c0_35, %c0_36] : memref<1x4xf32, #tpu.memory_space<vmem>>, vector<1x4xf32>
    %66 = vector.broadcast %65 : vector<1x4xf32> to vector<2x4xf32>
    %67 = arith.addf %64, %66 : vector<2x4xf32>
    %c0_37 = arith.constant 0 : index
    %c0_38 = arith.constant 0 : index
    %68 = vector.load %arg8[%c0_37, %c0_38] : memref<2x4xf32, #tpu.memory_space<vmem>>, vector<2x4xf32>
    tpu.vector_store %arg8[%c0_37, %c0_38], %67 {strides = array<i32>} : memref<2x4xf32, #tpu.memory_space<vmem>>, vector<2x4xf32>,
    return
  }
  func.func @transform_0(%arg0: i32) -> (i32, i32, i32) {
    %c0_i32 = arith.constant 0 : i32
    %c0_i32_0 = arith.constant 0 : i32
    %c0_i32_1 = arith.constant 0 : i32
    %c0_i32_2 = arith.constant 0 : i32
    return %c0_i32, %c0_i32_0, %c0_i32_1 : i32, i32, i32
  }
  func.func @transform_1(%arg0: i32) -> (i32, i32) {
    %c0_i32 = arith.constant 0 : i32
    %c0_i32_0 = arith.constant 0 : i32
    %c0_i32_1 = arith.constant 0 : i32
    return %c0_i32, %c0_i32_0 : i32, i32
  }
  func.func @transform_2(%arg0: i32) -> (i32, i32) {
    %c0_i32 = arith.constant 0 : i32
    %c0_i32_0 = arith.constant 0 : i32
    %c0_i32_1 = arith.constant 0 : i32
    return %c0_i32, %c0_i32_0 : i32, i32
  }
  func.func @transform_3(%arg0: i32) -> (i32, i32) {
    %c0_i32 = arith.constant 0 : i32
    %c0_i32_0 = arith.constant 0 : i32
    %c0_i32_1 = arith.constant 0 : i32
    return %c0_i32, %c0_i32_0 : i32, i32
  }
  func.func @transform_4(%arg0: i32) -> (i32, i32) {
    %c0_i32 = arith.constant 0 : i32
    %c0_i32_0 = arith.constant 0 : i32
    %c0_i32_1 = arith.constant 0 : i32
    return %c0_i32, %c0_i32_0 : i32, i32
  }
  func.func @transform_5(%arg0: i32) -> (i32, i32) {
    %c0_i32 = arith.constant 0 : i32
    %c0_i32_0 = arith.constant 0 : i32
    %c0_i32_1 = arith.constant 0 : i32
    return %c0_i32, %c0_i32_0 : i32, i32
  }
  func.func @transform_6(%arg0: i32) -> (i32, i32) {
    %c0_i32 = arith.constant 0 : i32
    %c0_i32_0 = arith.constant 0 : i32
    %c0_i32_1 = arith.constant 0 : i32
    return %c0_i32, %c0_i32_0 : i32, i32
  }
  func.func @transform_7(%arg0: i32) -> (i32, i32) {
    %c0_i32 = arith.constant 0 : i32
    %c0_i32_0 = arith.constant 0 : i32
    %c0_i32_1 = arith.constant 0 : i32
    return %c0_i32, %c0_i32_0 : i32, i32
  }
}

</mosaic_0001>

<llo_original>
// kernel: df_submodule_forward.1
$region0: #{df_submodule_forward.1}
  #allocation0 [shape = 'u32[]', space=smem, size = 0x4, offset = 0x4, fixed_abs, tag = 'smem constant byte address 0x4 - core index']
  #allocation1 [shape = 'u32[144,128]{1,0:T(1,128)}', space=vmem, size = 0x12000, scoped, tag = 'internal scratch']
  %s0 = inlined_call_operand.vmem [shape: f32[2,8,16], index: 0, kind: input, shape index: {}]
  %s1 = inlined_call_operand.vmem [shape: f32[32,16], index: 1, kind: input, shape index: {}]
  %s2 = inlined_call_operand.vmem [shape: f32[32,32], index: 2, kind: input, shape index: {}]
  %s3 = inlined_call_operand.vmem [shape: f32[1,32], index: 3, kind: input, shape index: {}]
  %s4 = inlined_call_operand.vmem [shape: f32[1,32], index: 4, kind: input, shape index: {}]
  %s5 = inlined_call_operand.vmem [shape: f32[4,32], index: 5, kind: input, shape index: {}]
  %s6 = inlined_call_operand.vmem [shape: f32[1,4], index: 6, kind: input, shape index: {}]
  %s7 = inlined_call_operand.vmem [shape: f32[2,4], index: 7, kind: output, shape index: {}]
  %s8 = sld [smem:[#allocation0]]
  $region38: #{df_submodule_forward.1} parent=0
    _
  %s10 = ssub.s32 1, %s8
  %s11 = scalar_select 0, %s10, %s8
  // Predicated region
  $region2: #{df_submodule_forward.1} parent=0 // pred_check
    _
  $region3: #{df_submodule_forward.1} parent=0 // pred_check_branch
    %13 = sbr.rel (0) target = $region5
  $region4: #{df_submodule_forward.1} parent=0 // pred_region
    _
  $region5: #{df_submodule_forward.1} parent=0 // pred_fallthru
    _
  // Predicated region
  $region6: #{df_submodule_forward.1} parent=0 // pred_check
    _
  $region7: #{df_submodule_forward.1} parent=0 // pred_check_branch
    %15 = sbr.rel (0) target = $region9
  $region8: #{df_submodule_forward.1} parent=0 // pred_region
    _
  $region9: #{df_submodule_forward.1} parent=0 // pred_fallthru
    _
  // Predicated region
  $region10: #{df_submodule_forward.1} parent=0 // pred_check
    _
  $region11: #{df_submodule_forward.1} parent=0 // pred_check_branch
    %17 = sbr.rel (0) target = $region13
  $region12: #{df_submodule_forward.1} parent=0 // pred_region
    _
  $region13: #{df_submodule_forward.1} parent=0 // pred_fallthru
    _
  // Predicated region
  $region14: #{df_submodule_forward.1} parent=0 // pred_check
    _
  $region15: #{df_submodule_forward.1} parent=0 // pred_check_branch
    %19 = sbr.rel (0) target = $region17
  $region16: #{df_submodule_forward.1} parent=0 // pred_region
    _
  $region17: #{df_submodule_forward.1} parent=0 // pred_fallthru
    _
  // Predicated region
  $region18: #{df_submodule_forward.1} parent=0 // pred_check
    _
  $region19: #{df_submodule_forward.1} parent=0 // pred_check_branch
    %21 = sbr.rel (0) target = $region21
  $region20: #{df_submodule_forward.1} parent=0 // pred_region
    _
  $region21: #{df_submodule_forward.1} parent=0 // pred_fallthru
    _
  // Predicated region
  $region22: #{df_submodule_forward.1} parent=0 // pred_check
    _
  $region23: #{df_submodule_forward.1} parent=0 // pred_check_branch
    %23 = sbr.rel (0) target = $region25
  $region24: #{df_submodule_forward.1} parent=0 // pred_region
    _
  $region25: #{df_submodule_forward.1} parent=0 // pred_fallthru
    _
  // Predicated region
  $region26: #{df_submodule_forward.1} parent=0 // pred_check
    _
  $region27: #{df_submodule_forward.1} parent=0 // pred_check_branch
    %25 = sbr.rel (0) target = $region29
  $region28: #{df_submodule_forward.1} parent=0 // pred_region
    _
  $region29: #{df_submodule_forward.1} parent=0 // pred_fallthru
    _
  %v26 = vld [vmem:[%s1] sm:$0xff]
  %v27 = vld [vmem:[%s1 + $0x8] sm:$0xff]
  %v28 = vld [vmem:[%s1 + $0x10] sm:$0xff]
  %v29 = vld [vmem:[%s1 + $0x18] sm:$0xff]
  %v30 = vld [vmem:[%s2] sm:$0xff]
  %v31 = vld [vmem:[%s2 + $0x8] sm:$0xff]
  %v32 = vld [vmem:[%s2 + $0x10] sm:$0xff]
  %v33 = vld [vmem:[%s2 + $0x18] sm:$0xff]
  %38 = vrot.lane.b32.xlu0 %v30, 16
  %v39 = vpop.permute.xlu0 %38
  %40 = vrot.lane.b32.xlu0 %v31, 16
  %v41 = vpop.permute.xlu0 %40
  %42 = vrot.lane.b32.xlu0 %v32, 16
  %v43 = vpop.permute.xlu0 %42
  %44 = vrot.lane.b32.xlu0 %v33, 16
  %v45 = vpop.permute.xlu0 %44
  %vm50 = vcmask 130048
  %v51 = vsel %vm50, %v26, %v39
  %v52 = vsel %vm50, %v27, %v41
  %v53 = vsel %vm50, %v28, %v43
  %v54 = vsel %vm50, %v29, %v45
  %v55 = vld [vmem:[%s3] sm:$0x1]
  %v56 = vld [vmem:[%s4] sm:$0x1]
  %v57 = vadd.f32 %v55, %v56
  %v58 = vld [vmem:[%s0] sm:$0x1]
  %v59 = vld [vmem:[%s0 + $0x8] sm:$0x1]
  %v62 = vrot.slane %v59, 7
  %vm63 = vcmask 1041409
  %v64 = vsel %vm63, %v62, %v58
  %v66 = vsel %vm50, %v64, 0.0
  %v68 = vlaneseq
  %v69 = vshrl.u32 %v68, 7
  %v70 = vsub.s32 0, %v69
  %v71 = vrot.slane %v57, %v70
  %vm73 = vcmask 392192
  %v75 = vsel %vm73, %v66, 0
  %v78 = vsel %vm73, %v51, 0
  %v81 = vsel %vm73, %v52, 0
  %v84 = vsel %vm73, %v53, 0
  %v87 = vsel %vm73, %v54, 0
  %89 = vmatprep.subr.mxu0 0.0
  %90 = vmatpush1.xpose.msra.mxu0 0.0
  %91 = vmatprep.subr.mxu0 0.0
  %92 = vmatpush1.xpose.msra.mxu0 0.0
  %93 = vmatprep.subr.mxu0 0.0
  %94 = vmatpush1.xpose.msra.mxu0 0.0
  %95 = vmatprep.subr.mxu0 0.0
  %96 = vmatpush1.xpose.msra.mxu0 0.0
  %97 = vmatprep.subr.mxu0 0.0
  %98 = vmatpush1.xpose.msra.mxu0 0.0
  %99 = vmatprep.subr.mxu0 0.0
  %100 = vmatpush1.xpose.msra.mxu0 0.0
  %101 = vmatprep.subr.mxu0 0.0
  %102 = vmatpush1.xpose.msra.mxu0 0.0
  %103 = vmatprep.subr.mxu0 0.0
  %104 = vmatpush1.xpose.msra.mxu0 0.0
  %105 = vmatprep.subr.mxu0 0.0
  %106 = vmatpush1.xpose.msra.mxu0 0.0
  %107 = vmatprep.subr.mxu0 0.0
  %108 = vmatpush1.xpose.msra.mxu0 0.0
  %109 = vmatprep.subr.mxu0 0.0
  %110 = vmatpush1.xpose.msra.mxu0 0.0
  %111 = vmatprep.subr.mxu0 0.0
  %112 = vmatpush1.xpose.msra.mxu0 0.0
  %113 = vmatprep.subr.mxu0 0.0
  %114 = vmatpush1.xpose.msra.mxu0 %v87
  %115 = vmatprep.subr.mxu0 0.0
  %116 = vmatpush1.xpose.msra.mxu0 %v84
  %117 = vmatprep.subr.mxu0 0.0
  %118 = vmatpush1.xpose.msra.mxu0 %v81
  %119 = vmatprep.subr.mxu0 0.0
  %120 = vmatpush1.xpose.msra.mxu0 %v78
  %121 = vmatprep.subr.mxu0 0.0
  %122 = vmatpush2.xpose.msra.mxu0 0.0
  %123 = vmatprep.subr.mxu0 0.0
  %124 = vmatpush2.xpose.msra.mxu0 0.0
  %125 = vmatprep.subr.mxu0 0.0
  %126 = vmatpush2.xpose.msra.mxu0 0.0
  %127 = vmatprep.subr.mxu0 0.0
  %128 = vmatpush2.xpose.msra.mxu0 0.0
  %129 = vmatprep.subr.mxu0 0.0
  %130 = vmatpush2.xpose.msra.mxu0 0.0
  %131 = vmatprep.subr.mxu0 0.0
  %132 = vmatpush2.xpose.msra.mxu0 0.0
  %133 = vmatprep.subr.mxu0 0.0
  %134 = vmatpush2.xpose.msra.mxu0 0.0
  %135 = vmatprep.subr.mxu0 0.0
  %136 = vmatpush2.xpose.msra.mxu0 0.0
  %137 = vmatprep.subr.mxu0 0.0
  %138 = vmatpush2.xpose.msra.mxu0 0.0
  %139 = vmatprep.subr.mxu0 0.0
  %140 = vmatpush2.xpose.msra.mxu0 0.0
  %141 = vmatprep.subr.mxu0 0.0
  %142 = vmatpush2.xpose.msra.mxu0 0.0
  %143 = vmatprep.subr.mxu0 0.0
  %144 = vmatpush2.xpose.msra.mxu0 0.0
  %145 = vmatprep.subr.mxu0 0.0
  %146 = vmatpush2.xpose.msra.mxu0 0.0
  %147 = vmatprep.subr.mxu0 0.0
  %148 = vmatpush2.xpose.msra.mxu0 0.0
  %149 = vmatprep.subr.mxu0 0.0
  %150 = vmatpush2.xpose.msra.mxu0 0.0
  %151 = vmatprep.subr.mxu0 0.0
  %152 = vmatpush2.xpose.msra.mxu0 0.0
  %153 = vmatprep.mubr.f32.mxu0 0.0
  %154 = vmatmul.mubr.f32.gmra.mxu0 %v75
  %v155 = vpop.f32.mrf.mxu0
  %v156 = vadd.f32 %v71, %v155
  %v157 = vpop.f32.mrf.mxu0
  %158 = vdwg.mxu0
  %v159 = vtanh.pop %v156
  %v160 = vld [vmem:[%s0 + $0x1] sm:$0x1]
  %v161 = vld [vmem:[%s0 + $0x9] sm:$0x1]
  %v164 = vrot.slane %v161, 7
  %v165 = vsel %vm63, %v164, %v160
  %168 = vrot.lane.b32.xlu0 %v159, 16
  %v169 = vpop.permute.xlu0 %168
  %v171 = vsel %vm50, %v165, %v169
  %v173 = vsel %vm73, %v171, 0
  %175 = vmatprep.subr.mxu0 0.0
  %176 = vmatpush1.xpose.msra.mxu0 0.0
  %177 = vmatprep.subr.mxu0 0.0
  %178 = vmatpush1.xpose.msra.mxu0 0.0
  %179 = vmatprep.subr.mxu0 0.0
  %180 = vmatpush1.xpose.msra.mxu0 0.0
  %181 = vmatprep.subr.mxu0 0.0
  %182 = vmatpush1.xpose.msra.mxu0 0.0
  %183 = vmatprep.subr.mxu0 0.0
  %184 = vmatpush1.xpose.msra.mxu0 0.0
  %185 = vmatprep.subr.mxu0 0.0
  %186 = vmatpush1.xpose.msra.mxu0 0.0
  %187 = vmatprep.subr.mxu0 0.0
  %188 = vmatpush1.xpose.msra.mxu0 0.0
  %189 = vmatprep.subr.mxu0 0.0
  %190 = vmatpush1.xpose.msra.mxu0 0.0
  %191 = vmatprep.subr.mxu0 0.0
  %192 = vmatpush1.xpose.msra.mxu0 0.0
  %193 = vmatprep.subr.mxu0 0.0
  %194 = vmatpush1.xpose.msra.mxu0 0.0
  %195 = vmatprep.subr.mxu0 0.0
  %196 = vmatpush1.xpose.msra.mxu0 0.0
  %197 = vmatprep.subr.mxu0 0.0
  %198 = vmatpush1.xpose.msra.mxu0 0.0
  %199 = vmatprep.subr.mxu0 0.0
  %200 = vmatpush1.xpose.msra.mxu0 %v87
  %201 = vmatprep.subr.mxu0 0.0
  %202 = vmatpush1.xpose.msra.mxu0 %v84
  %203 = vmatprep.subr.mxu0 0.0
  %204 = vmatpush1.xpose.msra.mxu0 %v81
  %205 = vmatprep.subr.mxu0 0.0
  %206 = vmatpush1.xpose.msra.mxu0 %v78
  %207 = vmatprep.subr.mxu0 0.0
  %208 = vmatpush2.xpose.msra.mxu0 0.0
  %209 = vmatprep.subr.mxu0 0.0
  %210 = vmatpush2.xpose.msra.mxu0 0.0
  %211 = vmatprep.subr.mxu0 0.0
  %212 = vmatpush2.xpose.msra.mxu0 0.0
  %213 = vmatprep.subr.mxu0 0.0
  %214 = vmatpush2.xpose.msra.mxu0 0.0
  %215 = vmatprep.subr.mxu0 0.0
  %216 = vmatpush2.xpose.msra.mxu0 0.0
  %217 = vmatprep.subr.mxu0 0.0
  %218 = vmatpush2.xpose.msra.mxu0 0.0
  %219 = vmatprep.subr.mxu0 0.0
  %220 = vmatpush2.xpose.msra.mxu0 0.0
  %221 = vmatprep.subr.mxu0 0.0
  %222 = vmatpush2.xpose.msra.mxu0 0.0
  %223 = vmatprep.subr.mxu0 0.0
  %224 = vmatpush2.xpose.msra.mxu0 0.0
  %225 = vmatprep.subr.mxu0 0.0
  %226 = vmatpush2.xpose.msra.mxu0 0.0
  %227 = vmatprep.subr.mxu0 0.0
  %228 = vmatpush2.xpose.msra.mxu0 0.0
  %229 = vmatprep.subr.mxu0 0.0
  %230 = vmatpush2.xpose.msra.mxu0 0.0
  %231 = vmatprep.subr.mxu0 0.0
  %232 = vmatpush2.xpose.msra.mxu0 0.0
  %233 = vmatprep.subr.mxu0 0.0
  %234 = vmatpush2.xpose.msra.mxu0 0.0
  %235 = vmatprep.subr.mxu0 0.0
  %236 = vmatpush2.xpose.msra.mxu0 0.0
  %237 = vmatprep.subr.mxu0 0.0
  %238 = vmatpush2.xpose.msra.mxu0 0.0
  %239 = vmatprep.mubr.f32.mxu0 0.0
  %240 = vmatmul.mubr.f32.gmra.mxu0 %v173
  %v241 = vpop.f32.mrf.mxu0
  %v242 = vadd.f32 %v71, %v241
  %v243 = vpop.f32.mrf.mxu0
  %244 = vdwg.mxu0
  %v245 = vtanh.pop %v242
  %v246 = vld [vmem:[%s0 + $0x2] sm:$0x1]
  %v247 = vld [vmem:[%s0 + $0xa] sm:$0x1]
  %v250 = vrot.slane %v247, 7
  %v251 = vsel %vm63, %v250, %v246
  %254 = vrot.lane.b32.xlu0 %v245, 16
  %v255 = vpop.permute.xlu0 %254
  %v257 = vsel %vm50, %v251, %v255
  %v259 = vsel %vm73, %v257, 0
  %261 = vmatprep.subr.mxu0 0.0
  %262 = vmatpush1.xpose.msra.mxu0 0.0
  %263 = vmatprep.subr.mxu0 0.0
  %264 = vmatpush1.xpose.msra.mxu0 0.0
  %265 = vmatprep.subr.mxu0 0.0
  %266 = vmatpush1.xpose.msra.mxu0 0.0
  %267 = vmatprep.subr.mxu0 0.0
  %268 = vmatpush1.xpose.msra.mxu0 0.0
  %269 = vmatprep.subr.mxu0 0.0
  %270 = vmatpush1.xpose.msra.mxu0 0.0
  %271 = vmatprep.subr.mxu0 0.0
  %272 = vmatpush1.xpose.msra.mxu0 0.0
  %273 = vmatprep.subr.mxu0 0.0
  %274 = vmatpush1.xpose.msra.mxu0 0.0
  %275 = vmatprep.subr.mxu0 0.0
  %276 = vmatpush1.xpose.msra.mxu0 0.0
  %277 = vmatprep.subr.mxu0 0.0
  %278 = vmatpush1.xpose.msra.mxu0 0.0
  %279 = vmatprep.subr.mxu0 0.0
  %280 = vmatpush1.xpose.msra.mxu0 0.0
  %281 = vmatprep.subr.mxu0 0.0
  %282 = vmatpush1.xpose.msra.mxu0 0.0
  %283 = vmatprep.subr.mxu0 0.0
  %284 = vmatpush1.xpose.msra.mxu0 0.0
  %285 = vmatprep.subr.mxu0 0.0
  %286 = vmatpush1.xpose.msra.mxu0 %v87
  %287 = vmatprep.subr.mxu0 0.0
  %288 = vmatpush1.xpose.msra.mxu0 %v84
  %289 = vmatprep.subr.mxu0 0.0
  %290 = vmatpush1.xpose.msra.mxu0 %v81
  %291 = vmatprep.subr.mxu0 0.0
  %292 = vmatpush1.xpose.msra.mxu0 %v78
  %293 = vmatprep.subr.mxu0 0.0
  %294 = vmatpush2.xpose.msra.mxu0 0.0
  %295 = vmatprep.subr.mxu0 0.0
  %296 = vmatpush2.xpose.msra.mxu0 0.0
  %297 = vmatprep.subr.mxu0 0.0
  %298 = vmatpush2.xpose.msra.mxu0 0.0
  %299 = vmatprep.subr.mxu0 0.0
  %300 = vmatpush2.xpose.msra.mxu0 0.0
  %301 = vmatprep.subr.mxu0 0.0
  %302 = vmatpush2.xpose.msra.mxu0 0.0
  %303 = vmatprep.subr.mxu0 0.0
  %304 = vmatpush2.xpose.msra.mxu0 0.0
  %305 = vmatprep.subr.mxu0 0.0
  %306 = vmatpush2.xpose.msra.mxu0 0.0
  %307 = vmatprep.subr.mxu0 0.0
  %308 = vmatpush2.xpose.msra.mxu0 0.0
  %309 = vmatprep.subr.mxu0 0.0
  %310 = vmatpush2.xpose.msra.mxu0 0.0
  %311 = vmatprep.subr.mxu0 0.0
  %312 = vmatpush2.xpose.msra.mxu0 0.0
  %313 = vmatprep.subr.mxu0 0.0
  %314 = vmatpush2.xpose.msra.mxu0 0.0
  %315 = vmatprep.subr.mxu0 0.0
  %316 = vmatpush2.xpose.msra.mxu0 0.0
  %317 = vmatprep.subr.mxu0 0.0
  %318 = vmatpush2.xpose.msra.mxu0 0.0
  %319 = vmatprep.subr.mxu0 0.0
  %320 = vmatpush2.xpose.msra.mxu0 0.0
  %321 = vmatprep.subr.mxu0 0.0
  %322 = vmatpush2.xpose.msra.mxu0 0.0
  %323 = vmatprep.subr.mxu0 0.0
  %324 = vmatpush2.xpose.msra.mxu0 0.0
  %325 = vmatprep.mubr.f32.mxu0 0.0
  %326 = vmatmul.mubr.f32.gmra.mxu0 %v259
  %v327 = vpop.f32.mrf.mxu0
  %v328 = vadd.f32 %v71, %v327
  %v329 = vpop.f32.mrf.mxu0
  %330 = vdwg.mxu0
  %v331 = vtanh.pop %v328
  %v332 = vld [vmem:[%s0 + $0x3] sm:$0x1]
  %v333 = vld [vmem:[%s0 + $0xb] sm:$0x1]
  %v336 = vrot.slane %v333, 7
  %v337 = vsel %vm63, %v336, %v332
  %340 = vrot.lane.b32.xlu0 %v331, 16
  %v341 = vpop.permute.xlu0 %340
  %v343 = vsel %vm50, %v337, %v341
  %v345 = vsel %vm73, %v343, 0
  %347 = vmatprep.subr.mxu0 0.0
  %348 = vmatpush1.xpose.msra.mxu0 0.0
  %349 = vmatprep.subr.mxu0 0.0
  %350 = vmatpush1.xpose.msra.mxu0 0.0
  %351 = vmatprep.subr.mxu0 0.0
  %352 = vmatpush1.xpose.msra.mxu0 0.0
  %353 = vmatprep.subr.mxu0 0.0
  %354 = vmatpush1.xpose.msra.mxu0 0.0
  %355 = vmatprep.subr.mxu0 0.0
  %356 = vmatpush1.xpose.msra.mxu0 0.0
  %357 = vmatprep.subr.mxu0 0.0
  %358 = vmatpush1.xpose.msra.mxu0 0.0
  %359 = vmatprep.subr.mxu0 0.0
  %360 = vmatpush1.xpose.msra.mxu0 0.0
  %361 = vmatprep.subr.mxu0 0.0
  %362 = vmatpush1.xpose.msra.mxu0 0.0
  %363 = vmatprep.subr.mxu0 0.0
  %364 = vmatpush1.xpose.msra.mxu0 0.0
  %365 = vmatprep.subr.mxu0 0.0
  %366 = vmatpush1.xpose.msra.mxu0 0.0
  %367 = vmatprep.subr.mxu0 0.0
  %368 = vmatpush1.xpose.msra.mxu0 0.0
  %369 = vmatprep.subr.mxu0 0.0
  %370 = vmatpush1.xpose.msra.mxu0 0.0
  %371 = vmatprep.subr.mxu0 0.0
  %372 = vmatpush1.xpose.msra.mxu0 %v87
  %373 = vmatprep.subr.mxu0 0.0
  %374 = vmatpush1.xpose.msra.mxu0 %v84
  %375 = vmatprep.subr.mxu0 0.0
  %376 = vmatpush1.xpose.msra.mxu0 %v81
  %377 = vmatprep.subr.mxu0 0.0
  %378 = vmatpush1.xpose.msra.mxu0 %v78
  %379 = vmatprep.subr.mxu0 0.0
  %380 = vmatpush2.xpose.msra.mxu0 0.0
  %381 = vmatprep.subr.mxu0 0.0
  %382 = vmatpush2.xpose.msra.mxu0 0.0
  %383 = vmatprep.subr.mxu0 0.0
  %384 = vmatpush2.xpose.msra.mxu0 0.0
  %385 = vmatprep.subr.mxu0 0.0
  %386 = vmatpush2.xpose.msra.mxu0 0.0
  %387 = vmatprep.subr.mxu0 0.0
  %388 = vmatpush2.xpose.msra.mxu0 0.0
  %389 = vmatprep.subr.mxu0 0.0
  %390 = vmatpush2.xpose.msra.mxu0 0.0
  %391 = vmatprep.subr.mxu0 0.0
  %392 = vmatpush2.xpose.msra.mxu0 0.0
  %393 = vmatprep.subr.mxu0 0.0
  %394 = vmatpush2.xpose.msra.mxu0 0.0
  %395 = vmatprep.subr.mxu0 0.0
  %396 = vmatpush2.xpose.msra.mxu0 0.0
  %397 = vmatprep.subr.mxu0 0.0
  %398 = vmatpush2.xpose.msra.mxu0 0.0
  %399 = vmatprep.subr.mxu0 0.0
  %400 = vmatpush2.xpose.msra.mxu0 0.0
  %401 = vmatprep.subr.mxu0 0.0
  %402 = vmatpush2.xpose.msra.mxu0 0.0
  %403 = vmatprep.subr.mxu0 0.0
  %404 = vmatpush2.xpose.msra.mxu0 0.0
  %405 = vmatprep.subr.mxu0 0.0
  %406 = vmatpush2.xpose.msra.mxu0 0.0
  %407 = vmatprep.subr.mxu0 0.0
  %408 = vmatpush2.xpose.msra.mxu0 0.0
  %409 = vmatprep.subr.mxu0 0.0
  %410 = vmatpush2.xpose.msra.mxu0 0.0
  %411 = vmatprep.mubr.f32.mxu0 0.0
  %412 = vmatmul.mubr.f32.gmra.mxu0 %v345
  %v413 = vpop.f32.mrf.mxu0
  %v414 = vadd.f32 %v71, %v413
  %v415 = vpop.f32.mrf.mxu0
  %416 = vdwg.mxu0
  %v417 = vtanh.pop %v414
  %v418 = vld [vmem:[%s0 + $0x4] sm:$0x1]
  %v419 = vld [vmem:[%s0 + $0xc] sm:$0x1]
  %v422 = vrot.slane %v419, 7
  %v423 = vsel %vm63, %v422, %v418
  %426 = vrot.lane.b32.xlu0 %v417, 16
  %v427 = vpop.permute.xlu0 %426
  %v429 = vsel %vm50, %v423, %v427
  %v431 = vsel %vm73, %v429, 0
  %433 = vmatprep.subr.mxu0 0.0
  %434 = vmatpush1.xpose.msra.mxu0 0.0
  %435 = vmatprep.subr.mxu0 0.0
  %436 = vmatpush1.xpose.msra.mxu0 0.0
  %437 = vmatprep.subr.mxu0 0.0
  %438 = vmatpush1.xpose.msra.mxu0 0.0
  %439 = vmatprep.subr.mxu0 0.0
  %440 = vmatpush1.xpose.msra.mxu0 0.0
  %441 = vmatprep.subr.mxu0 0.0
  %442 = vmatpush1.xpose.msra.mxu0 0.0
  %443 = vmatprep.subr.mxu0 0.0
  %444 = vmatpush1.xpose.msra.mxu0 0.0
  %445 = vmatprep.subr.mxu0 0.0
  %446 = vmatpush1.xpose.msra.mxu0 0.0
  %447 = vmatprep.subr.mxu0 0.0
  %448 = vmatpush1.xpose.msra.mxu0 0.0
  %449 = vmatprep.subr.mxu0 0.0
  %450 = vmatpush1.xpose.msra.mxu0 0.0
  %451 = vmatprep.subr.mxu0 0.0
  %452 = vmatpush1.xpose.msra.mxu0 0.0
  %453 = vmatprep.subr.mxu0 0.0
  %454 = vmatpush1.xpose.msra.mxu0 0.0
  %455 = vmatprep.subr.mxu0 0.0
  %456 = vmatpush1.xpose.msra.mxu0 0.0
  %457 = vmatprep.subr.mxu0 0.0
  %458 = vmatpush1.xpose.msra.mxu0 %v87
  %459 = vmatprep.subr.mxu0 0.0
  %460 = vmatpush1.xpose.msra.mxu0 %v84
  %461 = vmatprep.subr.mxu0 0.0
  %462 = vmatpush1.xpose.msra.mxu0 %v81
  %463 = vmatprep.subr.mxu0 0.0
  %464 = vmatpush1.xpose.msra.mxu0 %v78
  %465 = vmatprep.subr.mxu0 0.0
  %466 = vmatpush2.xpose.msra.mxu0 0.0
  %467 = vmatprep.subr.mxu0 0.0
  %468 = vmatpush2.xpose.msra.mxu0 0.0
  %469 = vmatprep.subr.mxu0 0.0
  %470 = vmatpush2.xpose.msra.mxu0 0.0
  %471 = vmatprep.subr.mxu0 0.0
  %472 = vmatpush2.xpose.msra.mxu0 0.0
  %473 = vmatprep.subr.mxu0 0.0
  %474 = vmatpush2.xpose.msra.mxu0 0.0
  %475 = vmatprep.subr.mxu0 0.0
  %476 = vmatpush2.xpose.msra.mxu0 0.0
  %477 = vmatprep.subr.mxu0 0.0
  %478 = vmatpush2.xpose.msra.mxu0 0.0
  %479 = vmatprep.subr.mxu0 0.0
  %480 = vmatpush2.xpose.msra.mxu0 0.0
  %481 = vmatprep.subr.mxu0 0.0
  %482 = vmatpush2.xpose.msra.mxu0 0.0
  %483 = vmatprep.subr.mxu0 0.0
  %484 = vmatpush2.xpose.msra.mxu0 0.0
  %485 = vmatprep.subr.mxu0 0.0
  %486 = vmatpush2.xpose.msra.mxu0 0.0
  %487 = vmatprep.subr.mxu0 0.0
  %488 = vmatpush2.xpose.msra.mxu0 0.0
  %489 = vmatprep.subr.mxu0 0.0
  %490 = vmatpush2.xpose.msra.mxu0 0.0
  %491 = vmatprep.subr.mxu0 0.0
  %492 = vmatpush2.xpose.msra.mxu0 0.0
  %493 = vmatprep.subr.mxu0 0.0
  %494 = vmatpush2.xpose.msra.mxu0 0.0
  %495 = vmatprep.subr.mxu0 0.0
  %496 = vmatpush2.xpose.msra.mxu0 0.0
  %497 = vmatprep.mubr.f32.mxu0 0.0
  %498 = vmatmul.mubr.f32.gmra.mxu0 %v431
  %v499 = vpop.f32.mrf.mxu0
  %v500 = vadd.f32 %v71, %v499
  %v501 = vpop.f32.mrf.mxu0
  %502 = vdwg.mxu0
  %v503 = vtanh.pop %v500
  %v504 = vld [vmem:[%s0 + $0x5] sm:$0x1]
  %v505 = vld [vmem:[%s0 + $0xd] sm:$0x1]
  %v508 = vrot.slane %v505, 7
  %v509 = vsel %vm63, %v508, %v504
  %512 = vrot.lane.b32.xlu0 %v503, 16
  %v513 = vpop.permute.xlu0 %512
  %v515 = vsel %vm50, %v509, %v513
  %v517 = vsel %vm73, %v515, 0
  %519 = vmatprep.subr.mxu0 0.0
  %520 = vmatpush1.xpose.msra.mxu0 0.0
  %521 = vmatprep.subr.mxu0 0.0
  %522 = vmatpush1.xpose.msra.mxu0 0.0
  %523 = vmatprep.subr.mxu0 0.0
  %524 = vmatpush1.xpose.msra.mxu0 0.0
  %525 = vmatprep.subr.mxu0 0.0
  %526 = vmatpush1.xpose.msra.mxu0 0.0
  %527 = vmatprep.subr.mxu0 0.0
  %528 = vmatpush1.xpose.msra.mxu0 0.0
  %529 = vmatprep.subr.mxu0 0.0
  %530 = vmatpush1.xpose.msra.mxu0 0.0
  %531 = vmatprep.subr.mxu0 0.0
  %532 = vmatpush1.xpose.msra.mxu0 0.0
  %533 = vmatprep.subr.mxu0 0.0
  %534 = vmatpush1.xpose.msra.mxu0 0.0
  %535 = vmatprep.subr.mxu0 0.0
  %536 = vmatpush1.xpose.msra.mxu0 0.0
  %537 = vmatprep.subr.mxu0 0.0
  %538 = vmatpush1.xpose.msra.mxu0 0.0
  %539 = vmatprep.subr.mxu0 0.0
  %540 = vmatpush1.xpose.msra.mxu0 0.0
  %541 = vmatprep.subr.mxu0 0.0
  %542 = vmatpush1.xpose.msra.mxu0 0.0
  %543 = vmatprep.subr.mxu0 0.0
  %544 = vmatpush1.xpose.msra.mxu0 %v87
  %545 = vmatprep.subr.mxu0 0.0
  %546 = vmatpush1.xpose.msra.mxu0 %v84
  %547 = vmatprep.subr.mxu0 0.0
  %548 = vmatpush1.xpose.msra.mxu0 %v81
  %549 = vmatprep.subr.mxu0 0.0
  %550 = vmatpush1.xpose.msra.mxu0 %v78
  %551 = vmatprep.subr.mxu0 0.0
  %552 = vmatpush2.xpose.msra.mxu0 0.0
  %553 = vmatprep.subr.mxu0 0.0
  %554 = vmatpush2.xpose.msra.mxu0 0.0
  %555 = vmatprep.subr.mxu0 0.0
  %556 = vmatpush2.xpose.msra.mxu0 0.0
  %557 = vmatprep.subr.mxu0 0.0
  %558 = vmatpush2.xpose.msra.mxu0 0.0
  %559 = vmatprep.subr.mxu0 0.0
  %560 = vmatpush2.xpose.msra.mxu0 0.0
  %561 = vmatprep.subr.mxu0 0.0
  %562 = vmatpush2.xpose.msra.mxu0 0.0
  %563 = vmatprep.subr.mxu0 0.0
  %564 = vmatpush2.xpose.msra.mxu0 0.0
  %565 = vmatprep.subr.mxu0 0.0
  %566 = vmatpush2.xpose.msra.mxu0 0.0
  %567 = vmatprep.subr.mxu0 0.0
  %568 = vmatpush2.xpose.msra.mxu0 0.0
  %569 = vmatprep.subr.mxu0 0.0
  %570 = vmatpush2.xpose.msra.mxu0 0.0
  %571 = vmatprep.subr.mxu0 0.0
  %572 = vmatpush2.xpose.msra.mxu0 0.0
  %573 = vmatprep.subr.mxu0 0.0
  %574 = vmatpush2.xpose.msra.mxu0 0.0
  %575 = vmatprep.subr.mxu0 0.0
  %576 = vmatpush2.xpose.msra.mxu0 0.0
  %577 = vmatprep.subr.mxu0 0.0
  %578 = vmatpush2.xpose.msra.mxu0 0.0
  %579 = vmatprep.subr.mxu0 0.0
  %580 = vmatpush2.xpose.msra.mxu0 0.0
  %581 = vmatprep.subr.mxu0 0.0
  %582 = vmatpush2.xpose.msra.mxu0 0.0
  %583 = vmatprep.mubr.f32.mxu0 0.0
  %584 = vmatmul.mubr.f32.gmra.mxu0 %v517
  %v585 = vpop.f32.mrf.mxu0
  %v586 = vadd.f32 %v71, %v585
  %v587 = vpop.f32.mrf.mxu0
  %588 = vdwg.mxu0
  %v589 = vtanh.pop %v586
  %v590 = vld [vmem:[%s0 + $0x6] sm:$0x1]
  %v591 = vld [vmem:[%s0 + $0xe] sm:$0x1]
  %v594 = vrot.slane %v591, 7
  %v595 = vsel %vm63, %v594, %v590
  %598 = vrot.lane.b32.xlu0 %v589, 16
  %v599 = vpop.permute.xlu0 %598
  %v601 = vsel %vm50, %v595, %v599
  %v603 = vsel %vm73, %v601, 0
  %605 = vmatprep.subr.mxu0 0.0
  %606 = vmatpush1.xpose.msra.mxu0 0.0
  %607 = vmatprep.subr.mxu0 0.0
  %608 = vmatpush1.xpose.msra.mxu0 0.0
  %609 = vmatprep.subr.mxu0 0.0
  %610 = vmatpush1.xpose.msra.mxu0 0.0
  %611 = vmatprep.subr.mxu0 0.0
  %612 = vmatpush1.xpose.msra.mxu0 0.0
  %613 = vmatprep.subr.mxu0 0.0
  %614 = vmatpush1.xpose.msra.mxu0 0.0
  %615 = vmatprep.subr.mxu0 0.0
  %616 = vmatpush1.xpose.msra.mxu0 0.0
  %617 = vmatprep.subr.mxu0 0.0
  %618 = vmatpush1.xpose.msra.mxu0 0.0
  %619 = vmatprep.subr.mxu0 0.0
  %620 = vmatpush1.xpose.msra.mxu0 0.0
  %621 = vmatprep.subr.mxu0 0.0
  %622 = vmatpush1.xpose.msra.mxu0 0.0
  %623 = vmatprep.subr.mxu0 0.0
  %624 = vmatpush1.xpose.msra.mxu0 0.0
  %625 = vmatprep.subr.mxu0 0.0
  %626 = vmatpush1.xpose.msra.mxu0 0.0
  %627 = vmatprep.subr.mxu0 0.0
  %628 = vmatpush1.xpose.msra.mxu0 0.0
  %629 = vmatprep.subr.mxu0 0.0
  %630 = vmatpush1.xpose.msra.mxu0 %v87
  %631 = vmatprep.subr.mxu0 0.0
  %632 = vmatpush1.xpose.msra.mxu0 %v84
  %633 = vmatprep.subr.mxu0 0.0
  %634 = vmatpush1.xpose.msra.mxu0 %v81
  %635 = vmatprep.subr.mxu0 0.0
  %636 = vmatpush1.xpose.msra.mxu0 %v78
  %637 = vmatprep.subr.mxu0 0.0
  %638 = vmatpush2.xpose.msra.mxu0 0.0
  %639 = vmatprep.subr.mxu0 0.0
  %640 = vmatpush2.xpose.msra.mxu0 0.0
  %641 = vmatprep.subr.mxu0 0.0
  %642 = vmatpush2.xpose.msra.mxu0 0.0
  %643 = vmatprep.subr.mxu0 0.0
  %644 = vmatpush2.xpose.msra.mxu0 0.0
  %645 = vmatprep.subr.mxu0 0.0
  %646 = vmatpush2.xpose.msra.mxu0 0.0
  %647 = vmatprep.subr.mxu0 0.0
  %648 = vmatpush2.xpose.msra.mxu0 0.0
  %649 = vmatprep.subr.mxu0 0.0
  %650 = vmatpush2.xpose.msra.mxu0 0.0
  %651 = vmatprep.subr.mxu0 0.0
  %652 = vmatpush2.xpose.msra.mxu0 0.0
  %653 = vmatprep.subr.mxu0 0.0
  %654 = vmatpush2.xpose.msra.mxu0 0.0
  %655 = vmatprep.subr.mxu0 0.0
  %656 = vmatpush2.xpose.msra.mxu0 0.0
  %657 = vmatprep.subr.mxu0 0.0
  %658 = vmatpush2.xpose.msra.mxu0 0.0
  %659 = vmatprep.subr.mxu0 0.0
  %660 = vmatpush2.xpose.msra.mxu0 0.0
  %661 = vmatprep.subr.mxu0 0.0
  %662 = vmatpush2.xpose.msra.mxu0 0.0
  %663 = vmatprep.subr.mxu0 0.0
  %664 = vmatpush2.xpose.msra.mxu0 0.0
  %665 = vmatprep.subr.mxu0 0.0
  %666 = vmatpush2.xpose.msra.mxu0 0.0
  %667 = vmatprep.subr.mxu0 0.0
  %668 = vmatpush2.xpose.msra.mxu0 0.0
  %669 = vmatprep.mubr.f32.mxu0 0.0
  %670 = vmatmul.mubr.f32.gmra.mxu0 %v603
  %v671 = vpop.f32.mrf.mxu0
  %v672 = vadd.f32 %v71, %v671
  %v673 = vpop.f32.mrf.mxu0
  %674 = vdwg.mxu0
  %v675 = vtanh.pop %v672
  %v676 = vld [vmem:[%s0 + $0x7] sm:$0x1]
  %v677 = vld [vmem:[%s0 + $0xf] sm:$0x1]
  %v680 = vrot.slane %v677, 7
  %v681 = vsel %vm63, %v680, %v676
  %684 = vrot.lane.b32.xlu0 %v675, 16
  %v685 = vpop.permute.xlu0 %684
  %v687 = vsel %vm50, %v681, %v685
  %v689 = vsel %vm73, %v687, 0
  %691 = vmatprep.subr.mxu0 0.0
  %692 = vmatpush1.xpose.msra.mxu0 0.0
  %693 = vmatprep.subr.mxu0 0.0
  %694 = vmatpush1.xpose.msra.mxu0 0.0
  %695 = vmatprep.subr.mxu0 0.0
  %696 = vmatpush1.xpose.msra.mxu0 0.0
  %697 = vmatprep.subr.mxu0 0.0
  %698 = vmatpush1.xpose.msra.mxu0 0.0
  %699 = vmatprep.subr.mxu0 0.0
  %700 = vmatpush1.xpose.msra.mxu0 0.0
  %701 = vmatprep.subr.mxu0 0.0
  %702 = vmatpush1.xpose.msra.mxu0 0.0
  %703 = vmatprep.subr.mxu0 0.0
  %704 = vmatpush1.xpose.msra.mxu0 0.0
  %705 = vmatprep.subr.mxu0 0.0
  %706 = vmatpush1.xpose.msra.mxu0 0.0
  %707 = vmatprep.subr.mxu0 0.0
  %708 = vmatpush1.xpose.msra.mxu0 0.0
  %709 = vmatprep.subr.mxu0 0.0
  %710 = vmatpush1.xpose.msra.mxu0 0.0
  %711 = vmatprep.subr.mxu0 0.0
  %712 = vmatpush1.xpose.msra.mxu0 0.0
  %713 = vmatprep.subr.mxu0 0.0
  %714 = vmatpush1.xpose.msra.mxu0 0.0
  %715 = vmatprep.subr.mxu0 0.0
  %716 = vmatpush1.xpose.msra.mxu0 %v87
  %717 = vmatprep.subr.mxu0 0.0
  %718 = vmatpush1.xpose.msra.mxu0 %v84
  %719 = vmatprep.subr.mxu0 0.0
  %720 = vmatpush1.xpose.msra.mxu0 %v81
  %721 = vmatprep.subr.mxu0 0.0
  %722 = vmatpush1.xpose.msra.mxu0 %v78
  %723 = vmatprep.subr.mxu0 0.0
  %724 = vmatpush2.xpose.msra.mxu0 0.0
  %725 = vmatprep.subr.mxu0 0.0
  %726 = vmatpush2.xpose.msra.mxu0 0.0
  %727 = vmatprep.subr.mxu0 0.0
  %728 = vmatpush2.xpose.msra.mxu0 0.0
  %729 = vmatprep.subr.mxu0 0.0
  %730 = vmatpush2.xpose.msra.mxu0 0.0
  %731 = vmatprep.subr.mxu0 0.0
  %732 = vmatpush2.xpose.msra.mxu0 0.0
  %733 = vmatprep.subr.mxu0 0.0
  %734 = vmatpush2.xpose.msra.mxu0 0.0
  %735 = vmatprep.subr.mxu0 0.0
  %736 = vmatpush2.xpose.msra.mxu0 0.0
  %737 = vmatprep.subr.mxu0 0.0
  %738 = vmatpush2.xpose.msra.mxu0 0.0
  %739 = vmatprep.subr.mxu0 0.0
  %740 = vmatpush2.xpose.msra.mxu0 0.0
  %741 = vmatprep.subr.mxu0 0.0
  %742 = vmatpush2.xpose.msra.mxu0 0.0
  %743 = vmatprep.subr.mxu0 0.0
  %744 = vmatpush2.xpose.msra.mxu0 0.0
  %745 = vmatprep.subr.mxu0 0.0
  %746 = vmatpush2.xpose.msra.mxu0 0.0
  %747 = vmatprep.subr.mxu0 0.0
  %748 = vmatpush2.xpose.msra.mxu0 0.0
  %749 = vmatprep.subr.mxu0 0.0
  %750 = vmatpush2.xpose.msra.mxu0 0.0
  %751 = vmatprep.subr.mxu0 0.0
  %752 = vmatpush2.xpose.msra.mxu0 0.0
  %753 = vmatprep.subr.mxu0 0.0
  %754 = vmatpush2.xpose.msra.mxu0 0.0
  %755 = vmatprep.mubr.f32.mxu0 0.0
  %756 = vmatmul.mubr.f32.gmra.mxu0 %v689
  %v757 = vpop.f32.mrf.mxu0
  %v758 = vadd.f32 %v71, %v757
  %v759 = vpop.f32.mrf.mxu0
  %760 = vdwg.mxu0
  %v761 = vtanh.pop %v758
  %v762 = vld [vmem:[%s5] sm:$0xf]
  %v763 = vld [vmem:[%s6] sm:$0x1]
  %v765 = vlaneseq
  %v766 = vshrl.u32 %v765, 7
  %v767 = vsub.s32 0, %v766
  %v768 = vrot.slane %v763, %v767
  %vm770 = vcmask 261120
  %v772 = vsel %vm770, %v761, 0
  %v775 = vsel %vm770, %v762, 0
  %777 = vmatprep.subr.mxu0 0.0
  %778 = vmatpush1.xpose.msra.mxu0 0.0
  %779 = vmatprep.subr.mxu0 0.0
  %780 = vmatpush1.xpose.msra.mxu0 0.0
  %781 = vmatprep.subr.mxu0 0.0
  %782 = vmatpush1.xpose.msra.mxu0 0.0
  %783 = vmatprep.subr.mxu0 0.0
  %784 = vmatpush1.xpose.msra.mxu0 0.0
  %785 = vmatprep.subr.mxu0 0.0
  %786 = vmatpush1.xpose.msra.mxu0 0.0
  %787 = vmatprep.subr.mxu0 0.0
  %788 = vmatpush1.xpose.msra.mxu0 0.0
  %789 = vmatprep.subr.mxu0 0.0
  %790 = vmatpush1.xpose.msra.mxu0 0.0
  %791 = vmatprep.subr.mxu0 0.0
  %792 = vmatpush1.xpose.msra.mxu0 0.0
  %793 = vmatprep.subr.mxu0 0.0
  %794 = vmatpush1.xpose.msra.mxu0 0.0
  %795 = vmatprep.subr.mxu0 0.0
  %796 = vmatpush1.xpose.msra.mxu0 0.0
  %797 = vmatprep.subr.mxu0 0.0
  %798 = vmatpush1.xpose.msra.mxu0 0.0
  %799 = vmatprep.subr.mxu0 0.0
  %800 = vmatpush1.xpose.msra.mxu0 0.0
  %801 = vmatprep.subr.mxu0 0.0
  %802 = vmatpush1.xpose.msra.mxu0 0.0
  %803 = vmatprep.subr.mxu0 0.0
  %804 = vmatpush1.xpose.msra.mxu0 0.0
  %805 = vmatprep.subr.mxu0 0.0
  %806 = vmatpush1.xpose.msra.mxu0 0.0
  %807 = vmatprep.subr.mxu0 0.0
  %808 = vmatpush1.xpose.msra.mxu0 %v775
  %809 = vmatprep.subr.mxu0 0.0
  %810 = vmatpush2.xpose.msra.mxu0 0.0
  %811 = vmatprep.subr.mxu0 0.0
  %812 = vmatpush2.xpose.msra.mxu0 0.0
  %813 = vmatprep.subr.mxu0 0.0
  %814 = vmatpush2.xpose.msra.mxu0 0.0
  %815 = vmatprep.subr.mxu0 0.0
  %816 = vmatpush2.xpose.msra.mxu0 0.0
  %817 = vmatprep.subr.mxu0 0.0
  %818 = vmatpush2.xpose.msra.mxu0 0.0
  %819 = vmatprep.subr.mxu0 0.0
  %820 = vmatpush2.xpose.msra.mxu0 0.0
  %821 = vmatprep.subr.mxu0 0.0
  %822 = vmatpush2.xpose.msra.mxu0 0.0
  %823 = vmatprep.subr.mxu0 0.0
  %824 = vmatpush2.xpose.msra.mxu0 0.0
  %825 = vmatprep.subr.mxu0 0.0
  %826 = vmatpush2.xpose.msra.mxu0 0.0
  %827 = vmatprep.subr.mxu0 0.0
  %828 = vmatpush2.xpose.msra.mxu0 0.0
  %829 = vmatprep.subr.mxu0 0.0
  %830 = vmatpush2.xpose.msra.mxu0 0.0
  %831 = vmatprep.subr.mxu0 0.0
  %832 = vmatpush2.xpose.msra.mxu0 0.0
  %833 = vmatprep.subr.mxu0 0.0
  %834 = vmatpush2.xpose.msra.mxu0 0.0
  %835 = vmatprep.subr.mxu0 0.0
  %836 = vmatpush2.xpose.msra.mxu0 0.0
  %837 = vmatprep.subr.mxu0 0.0
  %838 = vmatpush2.xpose.msra.mxu0 0.0
  %839 = vmatprep.subr.mxu0 0.0
  %840 = vmatpush2.xpose.msra.mxu0 0.0
  %841 = vmatprep.mubr.f32.mxu0 0.0
  %842 = vmatmul.mubr.f32.gmra.mxu0 %v772
  %v843 = vpop.f32.mrf.mxu0
  %v844 = vadd.f32 %v768, %v843
  %v845 = vpop.f32.mrf.mxu0
  %846 = vdwg.mxu0
  %vm847 = vcmask 25600
  %848 = vst.msk [vmem:[%s7] sm:$0x3] %vm847, %v844
  // Predicated region
  $region30: #{df_submodule_forward.1} parent=0 // pred_check
    _
  $region31: #{df_submodule_forward.1} parent=0 // pred_check_branch
    %850 = sbr.rel (0) target = $region33
  $region32: #{df_submodule_forward.1} parent=0 // pred_region
    _
  $region33: #{df_submodule_forward.1} parent=0 // pred_fallthru
    _
  // Predicated region
  $region34: #{df_submodule_forward.1} parent=0 // pred_check
    _
  $region35: #{df_submodule_forward.1} parent=0 // pred_check_branch
    %852 = sbr.rel (0) target = $region37
  $region36: #{df_submodule_forward.1} parent=0 // pred_region
    _
  $region37: #{df_submodule_forward.1} parent=0 // pred_fallthru
    _

</llo_original>
